<compile_context>
chip_gen: v6e
topology: v6e:2x2x1
jax: 0.10.0
libtpu: 0.0.40
codegen_flags: <defaults>
</compile_context>

<pallas_src>
import jax
import jax.numpy as jnp
from jax.experimental import pallas as pl
from jax.experimental.pallas import tpu as pltpu

_NEG = -1e30  # finite "minus infinity" for padded logit columns (avoids 0*inf NaN)


def _round_up(x, m):
    return (x + m - 1) // m * m


def _actor_kernel(x_ref, w1_ref, b1_ref, w2_ref, b2_ref, w3_ref, b3_ref, act_ref,
                  out_ref):
    # ----- MLP: Linear -> tanh -> Linear -> tanh -> Linear (Identity) -----
    # Matmul inputs are bf16, accumulation is f32 on the MXU; bias/tanh in f32.
    x = x_ref[...]                                                        # (TB, D) bf16
    h1 = jnp.tanh(
        jnp.dot(x, w1_ref[...], preferred_element_type=jnp.float32) + b1_ref[...])
    h2 = jnp.tanh(
        jnp.dot(h1.astype(jnp.bfloat16), w2_ref[...],
                preferred_element_type=jnp.float32) + b2_ref[...])
    logits = (
        jnp.dot(h2.astype(jnp.bfloat16), w3_ref[...],
                preferred_element_type=jnp.float32) + b3_ref[...])        # (TB, A_pad)

    # ----- Categorical.log_prob(action): stable log-softmax + one-hot gather -----
    # Padded columns carry logit = _NEG, so exp underflows to exactly 0 and the
    # normalizer equals the real A-class normalizer.
    m = jnp.max(logits, axis=-1, keepdims=True)
    z = logits - m
    lse = jnp.log(jnp.sum(jnp.exp(z), axis=-1, keepdims=True))

    act = act_ref[...]                                                    # (TB, 1) int32
    col = jax.lax.broadcasted_iota(jnp.int32, logits.shape, 1)
    onehot = (col == act).astype(jnp.float32)
    logp = jnp.sum(z * onehot, axis=-1, keepdims=True) - lse              # (TB, 1)

    # Pack logp into the (always padded, never a real class) last lane so the
    # whole result goes out as one lane-dense unmasked store.
    out_ref[...] = jnp.where(col == logits.shape[-1] - 1, logp, logits)


def mlp_categorical_actor_forward(obs, action, params, *, tb=512):
    """Returns (logits, logp_a).  `logits` parameterize Categorical(logits=...)."""
    (w1, b1), (w2, b2), (w3, b3) = params
    B, D = obs.shape
    H1 = w1.shape[1]
    H2 = w2.shape[1]
    A = w3.shape[1]

    # Lane-dense output width: room for A logits + 1 packed logp column.
    A_pad = _round_up(A + 1, 128)
    # Batch tile: multiple of 8 sublanes, capped at `tb`; pad B to a tile multiple.
    TB = min(_round_up(int(tb), 8), _round_up(B, 8))
    B_pad = _round_up(B, TB)
    grid = (B_pad // TB,)

    # --- boundary prep: pad batch, pad final layer, cast matmul operands to bf16 ---
    obs_p = jnp.pad(obs, ((0, B_pad - B), (0, 0))).astype(jnp.bfloat16)
    act_p = jnp.pad(action.reshape(B, 1).astype(jnp.int32), ((0, B_pad - B), (0, 0)))

    w1b = w1.astype(jnp.bfloat16)
    w2b = w2.astype(jnp.bfloat16)
    w3b = jnp.pad(w3, ((0, 0), (0, A_pad - A))).astype(jnp.bfloat16)
    b1f = b1.astype(jnp.float32)
    b2f = b2.astype(jnp.float32)
    b3f = jnp.pad(b3.astype(jnp.float32), ((0, 0), (0, A_pad - A)),
                  constant_values=_NEG)

    row = lambda c: pl.BlockSpec((TB, c), lambda i: (i, 0))       # batch-streamed tiles
    const = lambda r, c: pl.BlockSpec((r, c), lambda i: (0, 0))   # VMEM-resident params

    cost = pl.CostEstimate(
        flops=2 * B_pad * (D * H1 + H1 * H2 + H2 * A_pad),
        transcendentals=B_pad * (H1 + H2 + A_pad + 1),
        bytes_accessed=(obs_p.size * 2 + act_p.size * 4 + B_pad * A_pad * 4
                        + (w1b.size + w2b.size + w3b.size) * 2
                        + (b1f.size + b2f.size + b3f.size) * 4),
    )

    slab = pl.pallas_call(
        _actor_kernel,
        out_shape=jax.ShapeDtypeStruct((B_pad, A_pad), jnp.float32),
        grid_spec=pltpu.PrefetchScalarGridSpec(
            num_scalar_prefetch=0,
            grid=grid,
            in_specs=[
                row(D),                             # obs tile
                const(D, H1), const(1, H1),         # layer 1 (resident)
                const(H1, H2), const(1, H2),        # layer 2 (resident)
                const(H2, A_pad), const(1, A_pad),  # layer 3 (resident, padded)
                row(1),                             # action tile (int32)
            ],
            out_specs=pl.BlockSpec((TB, A_pad), lambda i: (i, 0)),
        ),
        compiler_params=pltpu.CompilerParams(
            dimension_semantics=("parallel",)),
        cost_estimate=cost,
    )(obs_p, w1b, b1f, w2b, b2f, w3b, b3f, act_p)

    logits = slab[:B, :A]
    logp_a = slab[:B, A_pad - 1]
    return logits, logp_a


def init_params(key, obs_dim, hidden_sizes, action_dim):
    """PyTorch-style Linear init: U(-1/sqrt(fan_in), 1/sqrt(fan_in)).

    Weights are stored transposed as (in_features, out_features)."""
    sizes = [obs_dim] + list(hidden_sizes) + [action_dim]
    params = []
    for j in range(len(sizes) - 1):
        key, kw, kb = jax.random.split(key, 3)
        fan_in, fan_out = sizes[j], sizes[j + 1]
        bound = 1.0 / jnp.sqrt(jnp.float32(fan_in))
        w = jax.random.uniform(kw, (fan_in, fan_out), jnp.float32, -bound, bound)
        b = jax.random.uniform(kb, (1, fan_out), jnp.float32, -bound, bound)
        params.append((w, b))
    return params


def reference_forward(obs, action, params):
    """Pure-JAX reference using the same bf16-matmul / f32-accumulate recipe."""
    (w1, b1), (w2, b2), (w3, b3) = params
    x = obs.astype(jnp.bfloat16)
    h1 = jnp.tanh(jnp.dot(x, w1.astype(jnp.bfloat16),
                          preferred_element_type=jnp.float32) + b1)
    h2 = jnp.tanh(jnp.dot(h1.astype(jnp.bfloat16), w2.astype(jnp.bfloat16),
                          preferred_element_type=jnp.float32) + b2)
    logits = jnp.dot(h2.astype(jnp.bfloat16), w3.astype(jnp.bfloat16),
                     preferred_element_type=jnp.float32) + b3
    logz = logits - jax.scipy.special.logsumexp(logits, axis=-1, keepdims=True)
    logp = jnp.take_along_axis(logz, action[:, None].astype(jnp.int32), axis=-1)[:, 0]
    return logits, logp


if __name__ == "__main__":
    key = jax.random.PRNGKey(0)
    k_obs, k_act, k_par, k_obs2, k_act2 = jax.random.split(key, 5)

    OBS_DIM, ACT_DIM = 16, 6
    HIDDEN = (32, 32)
    params = init_params(k_par, OBS_DIM, HIDDEN, ACT_DIM)

    # --- small demo batch (single tile) ---
    B = 8
    obs = jax.random.normal(k_obs, (B, OBS_DIM), jnp.float32)
    action = jax.random.randint(k_act, (B,), 0, ACT_DIM, jnp.int32)

    logits, logp_a = mlp_categorical_actor_forward(obs, action, params)
    jax.block_until_ready((logits, logp_a))

    ref_logits, ref_logp = reference_forward(obs, action, params)
    assert jnp.allclose(logits, ref_logits, atol=2e-3, rtol=2e-3)
    assert jnp.allclose(logp_a, ref_logp, atol=2e-3, rtol=2e-3)

    # --- larger batch exercising the batch grid + padding path ---
    B2 = 300
    obs2 = jax.random.normal(k_obs2, (B2, OBS_DIM), jnp.float32)
    action2 = jax.random.randint(k_act2, (B2,), 0, ACT_DIM, jnp.int32)

    logits2, logp2 = mlp_categorical_actor_forward(obs2, action2, params, tb=128)
    jax.block_until_ready((logits2, logp2))

    ref_logits2, ref_logp2 = reference_forward(obs2, action2, params)
    assert jnp.allclose(logits2, ref_logits2, atol=2e-3, rtol=2e-3)
    assert jnp.allclose(logp2, ref_logp2, atol=2e-3, rtol=2e-3)

    print("KERNEL_OK")
</pallas_src>

<mosaic_0001>
module attributes {stable_mosaic.version = 11 : i64} {
  func.func @_actor_kernel(%arg0: i32, %arg1: memref<8x16xbf16, #tpu.memory_space<vmem>>, %arg2: memref<16x32xbf16, #tpu.memory_space<vmem>>, %arg3: memref<1x32xf32, #tpu.memory_space<vmem>>, %arg4: memref<32x32xbf16, #tpu.memory_space<vmem>>, %arg5: memref<1x32xf32, #tpu.memory_space<vmem>>, %arg6: memref<32x128xbf16, #tpu.memory_space<vmem>>, %arg7: memref<1x128xf32, #tpu.memory_space<vmem>>, %arg8: memref<8x1xi32, #tpu.memory_space<vmem>>, %arg9: memref<8x128xf32, #tpu.memory_space<vmem>>) attributes {dimension_semantics = [#tpu.dimension_semantics<parallel>], iteration_bounds = array<i64: 1>, scalar_prefetch = 0 : i64, scratch_operands = 0 : i64, tpu.core_type = #tpu.core_type<tc>, window_params = [{transform_indices = @transform_0, window_bounds = array<i64: 8, 16>}, {pipeline_mode = #tpu.pipeline_mode<synchronous>, transform_indices = @transform_1, window_bounds = array<i64: 16, 32>}, {pipeline_mode = #tpu.pipeline_mode<synchronous>, transform_indices = @transform_2, window_bounds = array<i64: 1, 32>}, {pipeline_mode = #tpu.pipeline_mode<synchronous>, transform_indices = @transform_3, window_bounds = array<i64: 32, 32>}, {pipeline_mode = #tpu.pipeline_mode<synchronous>, transform_indices = @transform_4, window_bounds = array<i64: 1, 32>}, {pipeline_mode = #tpu.pipeline_mode<synchronous>, transform_indices = @transform_5, window_bounds = array<i64: 32, 128>}, {pipeline_mode = #tpu.pipeline_mode<synchronous>, transform_indices = @transform_6, window_bounds = array<i64: 1, 128>}, {transform_indices = @transform_7, window_bounds = array<i64: 8, 1>}, {transform_indices = @transform_8, window_bounds = array<i64: 8, 128>}]} {
    %c0 = arith.constant 0 : index
    %c0_0 = arith.constant 0 : index
    %0 = vector.load %arg1[%c0, %c0_0] : memref<8x16xbf16, #tpu.memory_space<vmem>>, vector<8x16xbf16>
    %c0_1 = arith.constant 0 : index
    %c0_2 = arith.constant 0 : index
    %1 = vector.load %arg2[%c0_1, %c0_2] : memref<16x32xbf16, #tpu.memory_space<vmem>>, vector<16x32xbf16>
    %cst = arith.constant dense<0.000000e+00> : vector<8x32xf32>
    %2 = tpu.matmul %0, %1, %cst {dimension_numbers = #tpu.dot_dimension_numbers<[1], [0], [0], [1], [0, 0, 1, 1], [], []>} : vector<8x16xbf16>, vector<16x32xbf16>, vector<8x32xf32> -> vector<8x32xf32>
    %c0_3 = arith.constant 0 : index
    %c0_4 = arith.constant 0 : index
    %3 = vector.load %arg3[%c0_3, %c0_4] : memref<1x32xf32, #tpu.memory_space<vmem>>, vector<1x32xf32>
    %4 = vector.broadcast %3 : vector<1x32xf32> to vector<8x32xf32>
    %5 = arith.addf %2, %4 : vector<8x32xf32>
    %6 = math.tanh %5 : vector<8x32xf32>
    %7 = arith.truncf %6 : vector<8x32xf32> to vector<8x32xbf16>
    %c0_5 = arith.constant 0 : index
    %c0_6 = arith.constant 0 : index
    %8 = vector.load %arg4[%c0_5, %c0_6] : memref<32x32xbf16, #tpu.memory_space<vmem>>, vector<32x32xbf16>
    %cst_7 = arith.constant dense<0.000000e+00> : vector<8x32xf32>
    %9 = tpu.matmul %7, %8, %cst_7 {dimension_numbers = #tpu.dot_dimension_numbers<[1], [0], [0], [1], [0, 0, 1, 1], [], []>} : vector<8x32xbf16>, vector<32x32xbf16>, vector<8x32xf32> -> vector<8x32xf32>
    %c0_8 = arith.constant 0 : index
    %c0_9 = arith.constant 0 : index
    %10 = vector.load %arg5[%c0_8, %c0_9] : memref<1x32xf32, #tpu.memory_space<vmem>>, vector<1x32xf32>
    %11 = vector.broadcast %10 : vector<1x32xf32> to vector<8x32xf32>
    %12 = arith.addf %9, %11 : vector<8x32xf32>
    %13 = math.tanh %12 : vector<8x32xf32>
    %14 = arith.truncf %13 : vector<8x32xf32> to vector<8x32xbf16>
    %c0_10 = arith.constant 0 : index
    %c0_11 = arith.constant 0 : index
    %15 = vector.load %arg6[%c0_10, %c0_11] : memref<32x128xbf16, #tpu.memory_space<vmem>>, vector<32x128xbf16>
    %cst_12 = arith.constant dense<0.000000e+00> : vector<8x128xf32>
    %16 = tpu.matmul %14, %15, %cst_12 {dimension_numbers = #tpu.dot_dimension_numbers<[1], [0], [0], [1], [0, 0, 1, 1], [], []>} : vector<8x32xbf16>, vector<32x128xbf16>, vector<8x128xf32> -> vector<8x128xf32>
    %c0_13 = arith.constant 0 : index
    %c0_14 = arith.constant 0 : index
    %17 = vector.load %arg7[%c0_13, %c0_14] : memref<1x128xf32, #tpu.memory_space<vmem>>, vector<1x128xf32>
    %18 = vector.broadcast %17 : vector<1x128xf32> to vector<8x128xf32>
    %19 = arith.addf %16, %18 : vector<8x128xf32>
    %cst_15 = arith.constant dense<0xFF800000> : vector<8xf32>
    %20 = vector.multi_reduction <maximumf>, %19, %cst_15 [1] : vector<8x128xf32> to vector<8xf32>
    %21 = vector.shape_cast %20 : vector<8xf32> to vector<8x1xf32>
    %22 = vector.broadcast %21 : vector<8x1xf32> to vector<8x128xf32>
    %23 = arith.subf %19, %22 : vector<8x128xf32>
    %24 = math.exp %23 : vector<8x128xf32>
    %cst_16 = arith.constant dense<0.000000e+00> : vector<8xf32>
    %25 = vector.multi_reduction <add>, %24, %cst_16 [1] : vector<8x128xf32> to vector<8xf32>
    %26 = vector.shape_cast %25 : vector<8xf32> to vector<8x1xf32>
    %27 = math.log %26 : vector<8x1xf32>
    %c0_17 = arith.constant 0 : index
    %c0_18 = arith.constant 0 : index
    %28 = vector.load %arg8[%c0_17, %c0_18] : memref<8x1xi32, #tpu.memory_space<vmem>>, vector<8x1xi32>
    %29 = tpu.iota {dimensions = array<i32: 1>} : vector<8x128xi32>
    %30 = vector.broadcast %28 : vector<8x1xi32> to vector<8x128xi32>
    %31 = arith.cmpi eq, %29, %30 : vector<8x128xi32>
    %32 = arith.extui %31 : vector<8x128xi1> to vector<8x128xi32>
    %33 = arith.sitofp %32 : vector<8x128xi32> to vector<8x128xf32>
    %34 = arith.mulf %23, %33 : vector<8x128xf32>
    %cst_19 = arith.constant dense<0.000000e+00> : vector<8xf32>
    %35 = vector.multi_reduction <add>, %34, %cst_19 [1] : vector<8x128xf32> to vector<8xf32>
    %36 = vector.shape_cast %35 : vector<8xf32> to vector<8x1xf32>
    %37 = arith.subf %36, %27 : vector<8x1xf32>
    %c127_i32 = arith.constant 127 : i32
    %38 = vector.broadcast %c127_i32 : i32 to vector<8x128xi32>
    %39 = arith.cmpi eq, %29, %38 : vector<8x128xi32>
    %40 = vector.shape_cast %37 : vector<8x1xf32> to vector<8x1xf32>
    %41 = vector.broadcast %40 : vector<8x1xf32> to vector<8x128xf32>
    %42 = arith.select %39, %41, %19 : vector<8x128xi1>, vector<8x128xf32>
    %c0_20 = arith.constant 0 : index
    %c0_21 = arith.constant 0 : index
    %43 = vector.load %arg9[%c0_20, %c0_21] : memref<8x128xf32, #tpu.memory_space<vmem>>, vector<8x128xf32>
    tpu.vector_store %arg9[%c0_20, %c0_21], %42 {strides = array<i32>} : memref<8x128xf32, #tpu.memory_space<vmem>>, vector<8x128xf32>,
    return
  }
  func.func @transform_0(%arg0: i32) -> (i32, i32) {
    %c0_i32 = arith.constant 0 : i32
    %c0_i32_0 = arith.constant 0 : i32
    return %arg0, %c0_i32 : i32, i32
  }
  func.func @transform_1(%arg0: i32) -> (i32, i32) {
    %c0_i32 = arith.constant 0 : i32
    %c0_i32_0 = arith.constant 0 : i32
    %c0_i32_1 = arith.constant 0 : i32
    return %c0_i32, %c0_i32_0 : i32, i32
  }
  func.func @transform_2(%arg0: i32) -> (i32, i32) {
    %c0_i32 = arith.constant 0 : i32
    %c0_i32_0 = arith.constant 0 : i32
    %c0_i32_1 = arith.constant 0 : i32
    return %c0_i32, %c0_i32_0 : i32, i32
  }
  func.func @transform_3(%arg0: i32) -> (i32, i32) {
    %c0_i32 = arith.constant 0 : i32
    %c0_i32_0 = arith.constant 0 : i32
    %c0_i32_1 = arith.constant 0 : i32
    return %c0_i32, %c0_i32_0 : i32, i32
  }
  func.func @transform_4(%arg0: i32) -> (i32, i32) {
    %c0_i32 = arith.constant 0 : i32
    %c0_i32_0 = arith.constant 0 : i32
    %c0_i32_1 = arith.constant 0 : i32
    return %c0_i32, %c0_i32_0 : i32, i32
  }
  func.func @transform_5(%arg0: i32) -> (i32, i32) {
    %c0_i32 = arith.constant 0 : i32
    %c0_i32_0 = arith.constant 0 : i32
    %c0_i32_1 = arith.constant 0 : i32
    return %c0_i32, %c0_i32_0 : i32, i32
  }
  func.func @transform_6(%arg0: i32) -> (i32, i32) {
    %c0_i32 = arith.constant 0 : i32
    %c0_i32_0 = arith.constant 0 : i32
    %c0_i32_1 = arith.constant 0 : i32
    return %c0_i32, %c0_i32_0 : i32, i32
  }
  func.func @transform_7(%arg0: i32) -> (i32, i32) {
    %c0_i32 = arith.constant 0 : i32
    %c0_i32_0 = arith.constant 0 : i32
    return %arg0, %c0_i32 : i32, i32
  }
  func.func @transform_8(%arg0: i32) -> (i32, i32) {
    %c0_i32 = arith.constant 0 : i32
    %c0_i32_0 = arith.constant 0 : i32
    return %arg0, %c0_i32 : i32, i32
  }
}

</mosaic_0001>

<llo_original>
// kernel: tpu_custom_call.1
$region0: #{tpu_custom_call.1}
  #allocation0 [shape = 'u32[]', space=smem, size = 0x4, offset = 0x4, fixed_abs, tag = 'smem constant byte address 0x4 - core index']
  #allocation1 [shape = 'u32[144,128]{1,0:T(1,128)}', space=vmem, size = 0x12000, scoped, tag = 'internal scratch']
  %s0 = inlined_call_operand.hbm [shape: bf16[8,16], index: 0, kind: input, shape index: {}]
  %s1 = inlined_call_operand.hbm [shape: bf16[16,32], index: 1, kind: input, shape index: {}]
  %s2 = inlined_call_operand.vmem [shape: f32[1,32], index: 2, kind: input, shape index: {}]
  %s3 = inlined_call_operand.hbm [shape: bf16[32,32], index: 3, kind: input, shape index: {}]
  %s4 = inlined_call_operand.vmem [shape: f32[1,32], index: 4, kind: input, shape index: {}]
  %s5 = inlined_call_operand.vmem [shape: bf16[32,128], index: 5, kind: input, shape index: {}]
  %s6 = inlined_call_operand.hbm [shape: f32[1,128], index: 6, kind: input, shape index: {}]
  %s7 = inlined_call_operand.vmem [shape: s32[8,1], index: 7, kind: input, shape index: {}]
  %s8 = inlined_call_operand.hbm [shape: f32[8,128], index: 8, kind: output, shape index: {}]
  %s9 = sld [smem:[#allocation0]]
  $region58: #{tpu_custom_call.1} parent=0
    _
  %s11 = ssub.s32 1, %s9
  %s12 = scalar_select 0, %s11, %s9
  $region1: #{tpu_custom_call.1} parent=0
    #allocation2 [shape = 'u8[2048]{0}', space=vmem, size = 0x800, scoped, tag = 'input window, operand 0, single buffered']
    #allocation3 [shape = 's32[1]{0}', space=sflag, size = 0x4, scoped, tag = 'scoped memory for tpu_custom_call.1']
    #allocation4 [shape = 's32[1]{0}', space=sflag, size = 0x4, scoped, tag = 'scoped memory for tpu_custom_call.1']
    #allocation5 [shape = 'u8[4096]{0}', space=vmem, size = 0x1000, scoped, tag = 'input window, operand 1, single buffered']
    #allocation6 [shape = 's32[1]{0}', space=sflag, size = 0x4, scoped, tag = 'scoped memory for tpu_custom_call.1']
    #allocation7 [shape = 'u8[8192]{0}', space=vmem, size = 0x2000, scoped, tag = 'input window, operand 3, single buffered']
    #allocation8 [shape = 'u8[512]{0}', space=vmem, size = 0x400, scoped, tag = 'input window, operand 6, single buffered']
    #allocation9 [shape = 's32[1]{0}', space=sflag, size = 0x4, scoped, tag = 'scoped memory for tpu_custom_call.1']
    #allocation10 [shape = 'u8[4096]{0}', space=vmem, size = 0x1000, scoped, tag = 'output window, operand 0, single buffered']
    %13 = vsyncpa [#allocation3], 0
    %14 = vsyncpa [#allocation6], 0
    %15 = vsyncpa [#allocation9], 0
    %16 = vsyncpa [#allocation4], 0
    // Predicated region
    $region2: #{tpu_custom_call.1} parent=1 // pred_check
      _
    $region3: #{tpu_custom_call.1} parent=1 // pred_check_branch
      %18 = sbr.rel (0) target = $region5
    $region4: #{tpu_custom_call.1} parent=1 // pred_region
      %s20 = ssub.s32 64, 64
      %21 = vsyncadd [#allocation3], %s20
      %s23 = sshll.u32 [#allocation2], 4
      %s24 = int_to_ptr.vmem [resolvable:$true] %s23
      %26 = dma.hbm_to_vmem [thread:$0]  %s0, 64, %s24, [#allocation3]
    $region5: #{tpu_custom_call.1} parent=1 // pred_fallthru
      _
    // Predicated region
    $region6: #{tpu_custom_call.1} parent=1 // pred_check
      _
    $region7: #{tpu_custom_call.1} parent=1 // pred_check_branch
      %28 = sbr.rel (0) target = $region9
    $region8: #{tpu_custom_call.1} parent=1 // pred_region
      %s30 = ssub.s32 128, 128
      %31 = vsyncadd [#allocation6], %s30
      %s32 = sshll.u32 [#allocation5], 4
      %s33 = int_to_ptr.vmem [resolvable:$true] %s32
      %38 = dma.hbm_to_vmem [thread:$0]  %s1, 128, %s33, [#allocation6], 64, 64, 4
    $region9: #{tpu_custom_call.1} parent=1 // pred_fallthru
      _
    // Predicated region
    $region10: #{tpu_custom_call.1} parent=1 // pred_check
      _
    $region11: #{tpu_custom_call.1} parent=1 // pred_check_branch
      %40 = sbr.rel (0) target = $region13
    $region12: #{tpu_custom_call.1} parent=1 // pred_region
      _
    $region13: #{tpu_custom_call.1} parent=1 // pred_fallthru
      _
    // Predicated region
    $region14: #{tpu_custom_call.1} parent=1 // pred_check
      _
    $region15: #{tpu_custom_call.1} parent=1 // pred_check_branch
      %42 = sbr.rel (0) target = $region17
    $region16: #{tpu_custom_call.1} parent=1 // pred_region
      %s44 = ssub.s32 256, 256
      %45 = vsyncadd [#allocation6], %s44
      %s46 = sshll.u32 [#allocation7], 4
      %s47 = int_to_ptr.vmem [resolvable:$true] %s46
      %52 = dma.hbm_to_vmem [thread:$0]  %s3, 256, %s47, [#allocation6], 64, 64, 4
    $region17: #{tpu_custom_call.1} parent=1 // pred_fallthru
      _
    // Predicated region
    $region18: #{tpu_custom_call.1} parent=1 // pred_check
      _
    $region19: #{tpu_custom_call.1} parent=1 // pred_check_branch
      %54 = sbr.rel (0) target = $region21
    $region20: #{tpu_custom_call.1} parent=1 // pred_region
      _
    $region21: #{tpu_custom_call.1} parent=1 // pred_fallthru
      _
    // Predicated region
    $region22: #{tpu_custom_call.1} parent=1 // pred_check
      _
    $region23: #{tpu_custom_call.1} parent=1 // pred_check_branch
      %56 = sbr.rel (0) target = $region25
    $region24: #{tpu_custom_call.1} parent=1 // pred_region
      _
    $region25: #{tpu_custom_call.1} parent=1 // pred_fallthru
      _
    // Predicated region
    $region26: #{tpu_custom_call.1} parent=1 // pred_check
      _
    $region27: #{tpu_custom_call.1} parent=1 // pred_check_branch
      %58 = sbr.rel (0) target = $region29
    $region28: #{tpu_custom_call.1} parent=1 // pred_region
      %s60 = ssub.s32 16, 16
      %61 = vsyncadd [#allocation9], %s60
      %s63 = sshll.u32 [#allocation8], 4
      %s64 = int_to_ptr.vmem [resolvable:$true] %s63
      %66 = dma.hbm_to_vmem [thread:$0]  %s6, 16, %s64, [#allocation9]
    $region29: #{tpu_custom_call.1} parent=1 // pred_fallthru
      _
    // Predicated region
    $region30: #{tpu_custom_call.1} parent=1 // pred_check
      _
    $region31: #{tpu_custom_call.1} parent=1 // pred_check_branch
      %68 = sbr.rel (0) target = $region33
    $region32: #{tpu_custom_call.1} parent=1 // pred_region
      _
    $region33: #{tpu_custom_call.1} parent=1 // pred_fallthru
      _
    // Predicated region
    $region34: #{tpu_custom_call.1} parent=1 // pred_check
      _
    $region35: #{tpu_custom_call.1} parent=1 // pred_check_branch
      %70 = sbr.rel (0) target = $region37
    $region36: #{tpu_custom_call.1} parent=1 // pred_region
      %71 = dma.done [#allocation3], 64
    $region37: #{tpu_custom_call.1} parent=1 // pred_fallthru
      _
    // Predicated region
    $region38: #{tpu_custom_call.1} parent=1 // pred_check
      _
    $region39: #{tpu_custom_call.1} parent=1 // pred_check_branch
      %73 = sbr.rel (0) target = $region41
    $region40: #{tpu_custom_call.1} parent=1 // pred_region
      %74 = dma.done [#allocation6], 128
    $region41: #{tpu_custom_call.1} parent=1 // pred_fallthru
      _
    // Predicated region
    $region42: #{tpu_custom_call.1} parent=1 // pred_check
      _
    $region43: #{tpu_custom_call.1} parent=1 // pred_check_branch
      %76 = sbr.rel (0) target = $region45
    $region44: #{tpu_custom_call.1} parent=1 // pred_region
      %77 = dma.done [#allocation6], 256
    $region45: #{tpu_custom_call.1} parent=1 // pred_fallthru
      _
    // Predicated region
    $region46: #{tpu_custom_call.1} parent=1 // pred_check
      _
    $region47: #{tpu_custom_call.1} parent=1 // pred_check_branch
      %79 = sbr.rel (0) target = $region49
    $region48: #{tpu_custom_call.1} parent=1 // pred_region
      %80 = dma.done [#allocation9], 16
    $region49: #{tpu_custom_call.1} parent=1 // pred_fallthru
      _
    %v82 = vld [vmem:[#allocation2] sm:$0xf]
    %v83 = vld [vmem:[#allocation5] sm:$0xf]
    %v84 = vld [vmem:[#allocation5 + $0x4] sm:$0xf]
    %v85 = vld [vmem:[%s2] sm:$0x1]
    %v87 = vlaneseq
    %v88 = vshrl.u32 %v87, 7
    %v89 = vsub.s32 0, %v88
    %v90 = vrot.slane %v85, %v89
    %v94 = vunpack.c.l.b16 %v83
    %v95 = vunpack.c.l.b16 %v84
    %v96 = vpack.c.b16 %v95, %v94
    %vm98 = vcmask 130048
    %v100 = vsel %vm98, %v82, 0
    %102 = vmatprep.subr.bf16.mxu0 0
    %103 = vmatpush1.bf16.msra.mxu0 0
    %104 = vmatprep.subr.bf16.mxu0 0
    %105 = vmatpush1.bf16.msra.mxu0 0
    %106 = vmatprep.subr.bf16.mxu0 0
    %107 = vmatpush1.bf16.msra.mxu0 0
    %108 = vmatprep.subr.bf16.mxu0 0
    %109 = vmatpush1.bf16.msra.mxu0 0
    %110 = vmatprep.subr.bf16.mxu0 0
    %111 = vmatpush1.bf16.msra.mxu0 0
    %112 = vmatprep.subr.bf16.mxu0 0
    %113 = vmatpush1.bf16.msra.mxu0 0
    %114 = vmatprep.subr.bf16.mxu0 0
    %115 = vmatpush1.bf16.msra.mxu0 0
    %116 = vmatprep.subr.bf16.mxu0 0
    %117 = vmatpush1.bf16.msra.mxu0 %v96
    %118 = vmatprep.subr.bf16.mxu0 0
    %119 = vmatpush2.bf16.msra.mxu0 0
    %120 = vmatprep.subr.bf16.mxu0 0
    %121 = vmatpush2.bf16.msra.mxu0 0
    %122 = vmatprep.subr.bf16.mxu0 0
    %123 = vmatpush2.bf16.msra.mxu0 0
    %124 = vmatprep.subr.bf16.mxu0 0
    %125 = vmatpush2.bf16.msra.mxu0 0
    %126 = vmatprep.subr.bf16.mxu0 0
    %127 = vmatpush2.bf16.msra.mxu0 0
    %128 = vmatprep.subr.bf16.mxu0 0
    %129 = vmatpush2.bf16.msra.mxu0 0
    %130 = vmatprep.subr.bf16.mxu0 0
    %131 = vmatpush2.bf16.msra.mxu0 0
    %132 = vmatprep.subr.bf16.mxu0 0
    %133 = vmatpush2.bf16.msra.mxu0 0
    %134 = vmatprep.mubr.bf16.mxu0 0
    %135 = vmatmul.mubr.bf16.gmra.mxu0 %v100
    %v136 = vpop.f32.mrf.mxu0
    %v137 = vadd.f32 %v90, %v136
    %v138 = vpop.f32.mrf.mxu0
    %v139 = vpop.f32.mrf.mxu0
    %v140 = vpop.f32.mrf.mxu0
    %141 = vdwg.mxu0
    %v142 = vtanh.pop %v137
    %v143 = vpack.c.bf16 %v142, %v142
    %v144 = vld [vmem:[#allocation7] sm:$0xf]
    %v145 = vld [vmem:[#allocation7 + $0x4] sm:$0xf]
    %v146 = vld [vmem:[#allocation7 + $0x8] sm:$0xf]
    %v147 = vld [vmem:[#allocation7 + $0xc] sm:$0xf]
    %v148 = vld [vmem:[%s4] sm:$0x1]
    %v150 = vlaneseq
    %v151 = vshrl.u32 %v150, 7
    %v152 = vsub.s32 0, %v151
    %v153 = vrot.slane %v148, %v152
    %v159 = vunpack.c.l.b16 %v144
    %v160 = vunpack.c.l.b16 %v145
    %v161 = vunpack.c.l.b16 %v146
    %v162 = vunpack.c.l.b16 %v147
    %v163 = vpack.c.b16 %v160, %v159
    %v164 = vpack.c.b16 %v162, %v161
    %vm167 = vcmask 261120
    %v169 = vsel %vm167, %v143, 0
    %171 = vmatprep.subr.bf16.mxu0 0
    %172 = vmatpush1.bf16.msra.mxu0 0
    %173 = vmatprep.subr.bf16.mxu0 0
    %174 = vmatpush1.bf16.msra.mxu0 0
    %175 = vmatprep.subr.bf16.mxu0 0
    %176 = vmatpush1.bf16.msra.mxu0 0
    %177 = vmatprep.subr.bf16.mxu0 0
    %178 = vmatpush1.bf16.msra.mxu0 0
    %179 = vmatprep.subr.bf16.mxu0 0
    %180 = vmatpush1.bf16.msra.mxu0 0
    %181 = vmatprep.subr.bf16.mxu0 0
    %182 = vmatpush1.bf16.msra.mxu0 0
    %183 = vmatprep.subr.bf16.mxu0 0
    %184 = vmatpush1.bf16.msra.mxu0 %v164
    %185 = vmatprep.subr.bf16.mxu0 0
    %186 = vmatpush1.bf16.msra.mxu0 %v163
    %187 = vmatprep.subr.bf16.mxu0 0
    %188 = vmatpush2.bf16.msra.mxu0 0
    %189 = vmatprep.subr.bf16.mxu0 0
    %190 = vmatpush2.bf16.msra.mxu0 0
    %191 = vmatprep.subr.bf16.mxu0 0
    %192 = vmatpush2.bf16.msra.mxu0 0
    %193 = vmatprep.subr.bf16.mxu0 0
    %194 = vmatpush2.bf16.msra.mxu0 0
    %195 = vmatprep.subr.bf16.mxu0 0
    %196 = vmatpush2.bf16.msra.mxu0 0
    %197 = vmatprep.subr.bf16.mxu0 0
    %198 = vmatpush2.bf16.msra.mxu0 0
    %199 = vmatprep.subr.bf16.mxu0 0
    %200 = vmatpush2.bf16.msra.mxu0 0
    %201 = vmatprep.subr.bf16.mxu0 0
    %202 = vmatpush2.bf16.msra.mxu0 0
    %203 = vmatprep.mubr.bf16.mxu0 0
    %204 = vmatmul.mubr.bf16.gmra.mxu0 %v169
    %v205 = vpop.f32.mrf.mxu0
    %v206 = vadd.f32 %v153, %v205
    %v207 = vpop.f32.mrf.mxu0
    %v208 = vpop.f32.mrf.mxu0
    %v209 = vpop.f32.mrf.mxu0
    %210 = vdwg.mxu0
    %v211 = vtanh.pop %v206
    %v212 = vpack.c.bf16 %v211, %v211
    %v213 = vld [vmem:[%s5] sm:$0xf]
    %v214 = vld [vmem:[%s5 + $0x4] sm:$0xf]
    %v215 = vld [vmem:[%s5 + $0x8] sm:$0xf]
    %v216 = vld [vmem:[%s5 + $0xc] sm:$0xf]
    %v217 = vld [vmem:[#allocation8] sm:$0x1]
    %v219 = vlaneseq
    %v220 = vshrl.u32 %v219, 7
    %v221 = vsub.s32 0, %v220
    %v222 = vrot.slane %v217, %v221
    %v228 = vunpack.c.l.b16 %v213
    %v229 = vunpack.c.l.b16 %v214
    %v230 = vunpack.c.l.b16 %v215
    %v231 = vunpack.c.l.b16 %v216
    %v232 = vpack.c.b16 %v229, %v228
    %v233 = vpack.c.b16 %v231, %v230
    %v237 = vsel %vm167, %v212, 0
    %239 = vmatprep.subr.bf16.mxu0 0
    %240 = vmatpush1.bf16.msra.mxu0 0
    %241 = vmatprep.subr.bf16.mxu0 0
    %242 = vmatpush1.bf16.msra.mxu0 0
    %243 = vmatprep.subr.bf16.mxu0 0
    %244 = vmatpush1.bf16.msra.mxu0 0
    %245 = vmatprep.subr.bf16.mxu0 0
    %246 = vmatpush1.bf16.msra.mxu0 0
    %247 = vmatprep.subr.bf16.mxu0 0
    %248 = vmatpush1.bf16.msra.mxu0 0
    %249 = vmatprep.subr.bf16.mxu0 0
    %250 = vmatpush1.bf16.msra.mxu0 0
    %251 = vmatprep.subr.bf16.mxu0 0
    %252 = vmatpush1.bf16.msra.mxu0 %v233
    %253 = vmatprep.subr.bf16.mxu0 0
    %254 = vmatpush1.bf16.msra.mxu0 %v232
    %255 = vmatprep.subr.bf16.mxu0 0
    %256 = vmatpush2.bf16.msra.mxu0 0
    %257 = vmatprep.subr.bf16.mxu0 0
    %258 = vmatpush2.bf16.msra.mxu0 0
    %259 = vmatprep.subr.bf16.mxu0 0
    %260 = vmatpush2.bf16.msra.mxu0 0
    %261 = vmatprep.subr.bf16.mxu0 0
    %262 = vmatpush2.bf16.msra.mxu0 0
    %263 = vmatprep.subr.bf16.mxu0 0
    %264 = vmatpush2.bf16.msra.mxu0 0
    %265 = vmatprep.subr.bf16.mxu0 0
    %266 = vmatpush2.bf16.msra.mxu0 0
    %267 = vmatprep.subr.bf16.mxu0 0
    %268 = vmatpush2.bf16.msra.mxu0 0
    %269 = vmatprep.subr.bf16.mxu0 0
    %270 = vmatpush2.bf16.msra.mxu0 0
    %271 = vmatprep.mubr.bf16.mxu0 0
    %272 = vmatmul.mubr.bf16.gmra.mxu0 %v237
    %v273 = vpop.f32.mrf.mxu0
    %v274 = vadd.f32 %v222, %v273
    %v275 = vpop.f32.mrf.mxu0
    %v276 = vpop.f32.mrf.mxu0
    %v277 = vpop.f32.mrf.mxu0
    %278 = vdwg.mxu0
    %279 = vmax.xlane.f32.xlu0 %v274
    %v280 = vpop.xlane.xlu0 %279
    %v281 = vsub.f32 %v274, %v280
    %v282 = vmul.f32 %v281, 1.442695
    %v283 = vpow.pop %v282
    %284 = vadd.xlane.f32.xlu0 %v283
    %v285 = vpop.xlane.xlu0 %284
    %v286 = vlog2.pop %v285
    %v287 = vmul.f32 %v286, 0.6931472
    %v288 = vld [vmem:[%s7] sm:$0xff]
    %v289 = vlaneseq
    %v290 = vand.u32 %v289, 127
    %291 = vset.pattern.permute.xlu0 0
    %292 = vperm.xlu0 %291, %v288
    %v293 = vpop.permute.xlu0 %292
    %vm294 = vcmp.eq.s32.totalorder %v290, %v293
    %v295 = vsel %vm294, 1, 0
    %v296 = vcvt.s32.f32 %v295
    %v297 = vmul.f32 %v281, %v296
    %298 = vadd.xlane.f32.xlu0 %v297
    %v299 = vpop.xlane.xlu0 %298
    %v300 = vsub.f32 %v299, %v287
    %vm301 = vcmp.eq.s32.totalorder %v290, 127
    %v302 = vsel %vm301, %v300, %v274
    %303 = vst [vmem:[#allocation10] sm:$0xff] %v302
    // Predicated region
    $region50: #{tpu_custom_call.1} parent=1 // pred_check
      _
    $region51: #{tpu_custom_call.1} parent=1 // pred_check_branch
      %305 = sbr.rel (0) target = $region53
    $region52: #{tpu_custom_call.1} parent=1 // pred_region
      %s307 = ssub.s32 128, 128
      %308 = vsyncadd [#allocation4], %s307
      %s310 = sshll.u32 [#allocation10], 4
      %s311 = int_to_ptr.vmem [resolvable:$true] %s310
      %313 = dma.vmem_to_hbm [thread:$0]  %s311, 128, %s8, [#allocation4]
    $region53: #{tpu_custom_call.1} parent=1 // pred_fallthru
      _
    // Predicated region
    $region54: #{tpu_custom_call.1} parent=1 // pred_check
      _
    $region55: #{tpu_custom_call.1} parent=1 // pred_check_branch
      %315 = sbr.rel (0) target = $region57
    $region56: #{tpu_custom_call.1} parent=1 // pred_region
      %316 = dma.done [#allocation4], 128
    $region57: #{tpu_custom_call.1} parent=1 // pred_fallthru
      _
    %317 = vsyncpa [#allocation3], 1
    %318 = vsyncpa [#allocation6], 1
    %319 = vsyncpa [#allocation9], 1
    %320 = vsyncpa [#allocation4], 1

</llo_original>
